<compile_context>
chip_gen: v6e
topology: v6e:2x2x1
jax: 0.10.0
libtpu: 0.0.40
codegen_flags: <defaults>
</compile_context>

<pallas_src>
import math

import jax
import jax.numpy as jnp
import numpy as np
from jax import lax
from jax.experimental import pallas as pl
from jax.experimental.pallas import tpu as pltpu


def _round_up(n, m):
    return ((n + m - 1) // m) * m


# ---------------------------------------------------------------------------
# Kernel
# ---------------------------------------------------------------------------
def _make_kernel(n_layers, n_actions, compute_dtype):
    """Kernel closed over the static fused-layer count / action width / dtype."""

    def kernel(x_ref, *rest):
        # rest = [W0, b0, W1, b1, ..., W_{L-1}, b_{L-1}, out_ref]
        w_refs = rest[0 : 2 * n_layers : 2]
        b_refs = rest[1 : 2 * n_layers : 2]
        out_ref = rest[2 * n_layers]

        h = x_ref[...]  # f32 [tb, d_in]
        z = None
        for l in range(n_layers):
            # bf16 (or f32) MXU matmul, f32 accumulation, f32 bias add.
            z = (
                jnp.dot(
                    h.astype(compute_dtype),
                    w_refs[l][...],
                    preferred_element_type=jnp.float32,
                )
                + b_refs[l][...]
            )
            if l < n_layers - 1:
                # Fused actor|critic hidden layer: ReLU for both towers.
                h = jnp.maximum(z, 0.0)

        # Final fused layer: columns [0:A) = actor pre-activation (already
        # scaled by 1/temperature at fusion time), column A = critic value,
        # remaining columns are zero padding.
        lane = lax.broadcasted_iota(jnp.int32, z.shape, 1)
        is_action = lane < n_actions

        # Actor: ReLU is applied after the last Linear too (module semantics),
        # temperature is folded into the weights, then softmax over A columns.
        logits = jnp.maximum(z, 0.0)
        masked = jnp.where(is_action, logits, -jnp.inf)
        m = jnp.max(masked, axis=-1, keepdims=True)  # finite (>= 0)
        e = jnp.exp(masked - m)                      # padded cols -> 0
        denom = jnp.sum(e, axis=-1, keepdims=True)

        # EUP approximate reciprocal + one Newton refinement (~f32 accuracy).
        inv = pl.reciprocal(denom, approx=True)
        inv = inv * (2.0 - denom * inv)
        probs = e * inv

        # Critic head has no final activation: keep the raw z in column A.
        out = jnp.where(lane == n_actions, z, probs)
        out_ref[...] = out.astype(out_ref.dtype)

    return kernel


# ---------------------------------------------------------------------------
# One-time parameter fusion / padding (host-side, done ONCE at init / cached)
# ---------------------------------------------------------------------------
def fuse_actor_critic_params(
    actor_params,
    critic_params,
    temperature=1.0,
    *,
    compute_dtype=jnp.bfloat16,
    lane=128,
):
    """Build block-diagonal (actor | critic) weights, zero-padded to 128 lanes.

    1/temperature is folded into the actor columns of the last layer (requires
    temperature > 0).  Call this once (e.g. at module init) and reuse the
    result across forward calls; re-fuse only if temperature changes.
    """
    a_ws, a_bs = actor_params
    c_ws, c_bs = critic_params
    n_layers = len(a_ws)
    # TODO(synk): unequal tower depths / critic output width != 1 need a
    # non-fused two-tower kernel variant (not the module's default config).
    assert len(c_ws) == n_layers and c_ws[-1].shape[1] == 1
    assert a_ws[0].shape[0] == c_ws[0].shape[0]
    assert float(temperature) > 0.0, "temperature folding requires temperature > 0"

    a_dims = [a_ws[0].shape[0]] + [w.shape[1] for w in a_ws]
    c_dims = [c_ws[0].shape[0]] + [w.shape[1] for w in c_ws]
    inv_t = 1.0 / float(temperature)

    fused_ws, fused_bs = [], []
    for l in range(n_layers):
        if l == 0:
            # Shared input: both towers read the same (unpadded) x columns.
            rows = a_dims[0]
            a_row, c_row = 0, 0
        else:
            rows = _round_up(a_dims[l] + c_dims[l], lane)
            a_row, c_row = 0, a_dims[l]
        cols = _round_up(a_dims[l + 1] + c_dims[l + 1], lane)

        aw = np.asarray(a_ws[l], np.float32)
        ab = np.asarray(a_bs[l], np.float32).reshape(1, -1)
        cw = np.asarray(c_ws[l], np.float32)
        cb = np.asarray(c_bs[l], np.float32).reshape(1, -1)
        if l == n_layers - 1:
            # Fold 1/temperature into the actor head (relu(z)*s == relu(z*s), s>0).
            aw = aw * inv_t
            ab = ab * inv_t

        w = np.zeros((rows, cols), np.float32)
        b = np.zeros((1, cols), np.float32)
        w[a_row : a_row + a_dims[l], : a_dims[l + 1]] = aw
        w[c_row : c_row + c_dims[l], a_dims[l + 1] : a_dims[l + 1] + c_dims[l + 1]] = cw
        b[:, : a_dims[l + 1]] = ab
        b[:, a_dims[l + 1] : a_dims[l + 1] + c_dims[l + 1]] = cb

        fused_ws.append(jnp.asarray(w, compute_dtype))   # bf16 by default
        fused_bs.append(jnp.asarray(b, jnp.float32))     # keep bias f32

    return {
        "ws": fused_ws,
        "bs": fused_bs,
        "n_actions": a_dims[-1],
        "d_in": a_dims[0],
        "compute_dtype": compute_dtype,
    }


# ---------------------------------------------------------------------------
# Public forward (thin per-call wrapper; no per-call weight rebuilding)
# ---------------------------------------------------------------------------
def separated_actor_critic_forward(x, fused_params, *, block_b=4096):
    """Forward pass of SeparatedActorCriticLinear in a single Pallas kernel.

    x: [B, D_in] (or [D_in]) float32.
    fused_params: result of fuse_actor_critic_params (temperature baked in).
    Returns (action [B, A], state_value [B, 1]).
    """
    fused_ws = fused_params["ws"]
    fused_bs = fused_params["bs"]
    n_actions = fused_params["n_actions"]
    d_in = fused_params["d_in"]
    compute_dtype = fused_params["compute_dtype"]
    n_layers = len(fused_ws)

    if x.ndim == 1:                       # mirror _prepare_x's unsqueeze
        x = x[None, :]
    assert x.shape[1] == d_in

    batch = x.shape[0]
    d_out_pad = fused_ws[-1].shape[1]

    # --- batch tile selection -------------------------------------------------
    block_b = max(8, _round_up(int(block_b), 8))     # always a multiple of 8
    rb = _round_up(batch, 8)
    tb = min(block_b, rb)
    # v7x megacore: ensure >= 2 grid steps whenever the batch can be split so
    # dimension_semantics=("parallel",) spreads rows over both TensorCores.
    if rb > 8 and pl.cdiv(batch, tb) < 2:
        tb = _round_up(pl.cdiv(rb, 2), 8)
    grid = (pl.cdiv(batch, tb),)

    # --- specs ------------------------------------------------------------------
    inputs = [x]
    in_specs = [
        # d_in equals the full last dim -> no lane padding / no x_pad copy.
        pl.BlockSpec((tb, d_in), lambda i: (i, 0)),
    ]
    for w, b in zip(fused_ws, fused_bs):
        inputs += [w, b]
        # Constant index_map -> weights/biases stay resident in VMEM across
        # all batch-grid steps (no re-DMA).
        in_specs += [
            pl.BlockSpec(w.shape, lambda i: (0, 0)),
            pl.BlockSpec(b.shape, lambda i: (0, 0)),
        ]

    out = pl.pallas_call(
        _make_kernel(n_layers, n_actions, compute_dtype),
        out_shape=jax.ShapeDtypeStruct((batch, d_out_pad), jnp.float32),
        grid=grid,
        in_specs=in_specs,
        out_specs=pl.BlockSpec((tb, d_out_pad), lambda i: (i, 0)),
        compiler_params=pltpu.CompilerParams(
            dimension_semantics=("parallel",),    # megacore-split the batch axis
        ),
    )(*inputs)

    # Single slice of the real columns; split afterwards (cheap on [B, A+1]).
    head = out[:, : n_actions + 1]
    action = head[:, :n_actions]
    value = head[:, n_actions:]
    return action, value


# ---------------------------------------------------------------------------
# Init + pure-JAX reference (PyTorch semantics)
# ---------------------------------------------------------------------------
def init_mlp_params(dims, key, dtype=jnp.float32):
    """PyTorch-style nn.Linear init (uniform, bound = 1/sqrt(fan_in)); W as [in, out]."""
    ws, bs = [], []
    keys = jax.random.split(key, len(dims) - 1)
    for i in range(len(dims) - 1):
        kw, kb = jax.random.split(keys[i])
        bound = 1.0 / math.sqrt(dims[i])
        ws.append(jax.random.uniform(kw, (dims[i], dims[i + 1]), dtype, -bound, bound))
        bs.append(jax.random.uniform(kb, (1, dims[i + 1]), dtype, -bound, bound))
    return ws, bs


def reference_forward(x, actor_params, critic_params, temperature=1.0):
    a_ws, a_bs = actor_params
    c_ws, c_bs = critic_params
    if x.ndim == 1:
        x = x[None, :]
    # Actor: ReLU after every linear (including the last), then softmax(logits/T).
    h = x
    for w, b in zip(a_ws, a_bs):
        h = jnp.maximum(h @ w + b, 0.0)
    action = jax.nn.softmax(h / temperature, axis=-1)
    # Critic: ReLU between layers, none after the last.
    g = x
    for i, (w, b) in enumerate(zip(c_ws, c_bs)):
        g = g @ w + b
        if i < len(c_ws) - 1:
            g = jnp.maximum(g, 0.0)
    return action, g


if __name__ == "__main__":
    # actor_network_dims = [obs_dim, hidden, hidden, num_actions]
    actor_dims = [32, 64, 64, 8]
    critic_dims = actor_dims.copy()
    critic_dims[-1] = 1                   # module default: critic dims = actor dims, last -> 1
    temperature = 1.5

    key = jax.random.PRNGKey(0)
    k_actor, k_critic, k_x1, k_x2 = jax.random.split(key, 4)
    actor_params = init_mlp_params(actor_dims, k_actor)
    critic_params = init_mlp_params(critic_dims, k_critic)

    # Fusion is done ONCE (hoisted out of the per-call path) and reused below.
    fused_f32 = fuse_actor_critic_params(
        actor_params, critic_params, temperature, compute_dtype=jnp.float32
    )
    fused_bf16 = fuse_actor_critic_params(
        actor_params, critic_params, temperature, compute_dtype=jnp.bfloat16
    )

    # --- small batch (typical single-step RL call), f32 path, tight tolerance ---
    batch = 2
    x = jax.random.normal(k_x1, (batch, actor_dims[0]), dtype=jnp.float32)
    action, value = separated_actor_critic_forward(x, fused_f32)
    action, value = jax.block_until_ready((action, value))
    ref_action, ref_value = reference_forward(x, actor_params, critic_params, temperature)
    np.testing.assert_allclose(np.asarray(action), np.asarray(ref_action), rtol=1e-4, atol=1e-5)
    np.testing.assert_allclose(np.asarray(value), np.asarray(ref_value), rtol=1e-4, atol=1e-5)
    assert action.shape == (batch, actor_dims[-1]) and value.shape == (batch, 1)

    # --- bigger ragged batch: exercises the multi-step grid (>=2 steps for
    #     megacore) with VMEM-resident weights, still f32 / tight tolerance ---
    batch2 = 300
    x2 = jax.random.normal(k_x2, (batch2, actor_dims[0]), dtype=jnp.float32)
    action2, value2 = separated_actor_critic_forward(x2, fused_f32)
    action2, value2 = jax.block_until_ready((action2, value2))
    ref_action2, ref_value2 = reference_forward(x2, actor_params, critic_params, temperature)
    np.testing.assert_allclose(np.asarray(action2), np.asarray(ref_action2), rtol=1e-4, atol=1e-5)
    np.testing.assert_allclose(np.asarray(value2), np.asarray(ref_value2), rtol=1e-4, atol=1e-5)
    assert action2.shape == (batch2, actor_dims[-1]) and value2.shape == (batch2, 1)

    # --- default bf16 compute path (MXU bf16 with f32 accumulation), loose tol ---
    action3, value3 = separated_actor_critic_forward(x2, fused_bf16)
    action3, value3 = jax.block_until_ready((action3, value3))
    np.testing.assert_allclose(np.asarray(action3), np.asarray(ref_action2), rtol=5e-2, atol=3e-2)
    np.testing.assert_allclose(np.asarray(value3), np.asarray(ref_value2), rtol=5e-2, atol=3e-2)

    print("KERNEL_OK")
</pallas_src>

<mosaic_0001>
module attributes {stable_mosaic.version = 11 : i64} {
  func.func @kernel(%arg0: i32, %arg1: memref<8x32xf32, #tpu.memory_space<vmem>>, %arg2: memref<32x128xf32, #tpu.memory_space<vmem>>, %arg3: memref<1x128xf32, #tpu.memory_space<vmem>>, %arg4: memref<128x128xf32, #tpu.memory_space<vmem>>, %arg5: memref<1x128xf32, #tpu.memory_space<vmem>>, %arg6: memref<128x128xf32, #tpu.memory_space<vmem>>, %arg7: memref<1x128xf32, #tpu.memory_space<vmem>>, %arg8: memref<8x128xf32, #tpu.memory_space<vmem>>) attributes {dimension_semantics = [#tpu.dimension_semantics<parallel>], iteration_bounds = array<i64: 1>, scalar_prefetch = 0 : i64, scratch_operands = 0 : i64, tpu.core_type = #tpu.core_type<tc>, window_params = [{transform_indices = @transform_0, window_bounds = array<i64: 8, 32>}, {pipeline_mode = #tpu.pipeline_mode<synchronous>, transform_indices = @transform_1, window_bounds = array<i64: 32, 128>}, {pipeline_mode = #tpu.pipeline_mode<synchronous>, transform_indices = @transform_2, window_bounds = array<i64: 1, 128>}, {pipeline_mode = #tpu.pipeline_mode<synchronous>, transform_indices = @transform_3, window_bounds = array<i64: 128, 128>}, {pipeline_mode = #tpu.pipeline_mode<synchronous>, transform_indices = @transform_4, window_bounds = array<i64: 1, 128>}, {pipeline_mode = #tpu.pipeline_mode<synchronous>, transform_indices = @transform_5, window_bounds = array<i64: 128, 128>}, {pipeline_mode = #tpu.pipeline_mode<synchronous>, transform_indices = @transform_6, window_bounds = array<i64: 1, 128>}, {transform_indices = @transform_7, window_bounds = array<i64: 8, 128>}]} {
    %c0 = arith.constant 0 : index
    %c0_0 = arith.constant 0 : index
    %0 = vector.load %arg1[%c0, %c0_0] : memref<8x32xf32, #tpu.memory_space<vmem>>, vector<8x32xf32>
    %c0_1 = arith.constant 0 : index
    %c0_2 = arith.constant 0 : index
    %1 = vector.load %arg2[%c0_1, %c0_2] : memref<32x128xf32, #tpu.memory_space<vmem>>, vector<32x128xf32>
    %cst = arith.constant dense<0.000000e+00> : vector<8x128xf32>
    %2 = tpu.matmul %0, %1, %cst {dimension_numbers = #tpu.dot_dimension_numbers<[1], [0], [0], [1], [0, 0, 1, 1], [], []>} : vector<8x32xf32>, vector<32x128xf32>, vector<8x128xf32> -> vector<8x128xf32>
    %c0_3 = arith.constant 0 : index
    %c0_4 = arith.constant 0 : index
    %3 = vector.load %arg3[%c0_3, %c0_4] : memref<1x128xf32, #tpu.memory_space<vmem>>, vector<1x128xf32>
    %4 = vector.broadcast %3 : vector<1x128xf32> to vector<8x128xf32>
    %5 = arith.addf %2, %4 : vector<8x128xf32>
    %cst_5 = arith.constant 0.000000e+00 : f32
    %6 = vector.broadcast %cst_5 : f32 to vector<8x128xf32>
    %7 = arith.maximumf %5, %6 : vector<8x128xf32>
    %c0_6 = arith.constant 0 : index
    %c0_7 = arith.constant 0 : index
    %8 = vector.load %arg4[%c0_6, %c0_7] : memref<128x128xf32, #tpu.memory_space<vmem>>, vector<128x128xf32>
    %cst_8 = arith.constant dense<0.000000e+00> : vector<8x128xf32>
    %9 = tpu.matmul %7, %8, %cst_8 {dimension_numbers = #tpu.dot_dimension_numbers<[1], [0], [0], [1], [0, 0, 1, 1], [], []>} : vector<8x128xf32>, vector<128x128xf32>, vector<8x128xf32> -> vector<8x128xf32>
    %c0_9 = arith.constant 0 : index
    %c0_10 = arith.constant 0 : index
    %10 = vector.load %arg5[%c0_9, %c0_10] : memref<1x128xf32, #tpu.memory_space<vmem>>, vector<1x128xf32>
    %11 = vector.broadcast %10 : vector<1x128xf32> to vector<8x128xf32>
    %12 = arith.addf %9, %11 : vector<8x128xf32>
    %cst_11 = arith.constant 0.000000e+00 : f32
    %13 = vector.broadcast %cst_11 : f32 to vector<8x128xf32>
    %14 = arith.maximumf %12, %13 : vector<8x128xf32>
    %c0_12 = arith.constant 0 : index
    %c0_13 = arith.constant 0 : index
    %15 = vector.load %arg6[%c0_12, %c0_13] : memref<128x128xf32, #tpu.memory_space<vmem>>, vector<128x128xf32>
    %cst_14 = arith.constant dense<0.000000e+00> : vector<8x128xf32>
    %16 = tpu.matmul %14, %15, %cst_14 {dimension_numbers = #tpu.dot_dimension_numbers<[1], [0], [0], [1], [0, 0, 1, 1], [], []>} : vector<8x128xf32>, vector<128x128xf32>, vector<8x128xf32> -> vector<8x128xf32>
    %c0_15 = arith.constant 0 : index
    %c0_16 = arith.constant 0 : index
    %17 = vector.load %arg7[%c0_15, %c0_16] : memref<1x128xf32, #tpu.memory_space<vmem>>, vector<1x128xf32>
    %18 = vector.broadcast %17 : vector<1x128xf32> to vector<8x128xf32>
    %19 = arith.addf %16, %18 : vector<8x128xf32>
    %20 = tpu.iota {dimensions = array<i32: 1>} : vector<8x128xi32>
    %c8_i32 = arith.constant 8 : i32
    %21 = vector.broadcast %c8_i32 : i32 to vector<8x128xi32>
    %22 = arith.cmpi slt, %20, %21 : vector<8x128xi32>
    %cst_17 = arith.constant 0.000000e+00 : f32
    %23 = vector.broadcast %cst_17 : f32 to vector<8x128xf32>
    %24 = arith.maximumf %19, %23 : vector<8x128xf32>
    %cst_18 = arith.constant 0xFF800000 : f32
    %25 = vector.broadcast %cst_18 : f32 to vector<8x128xf32>
    %26 = arith.select %22, %24, %25 : vector<8x128xi1>, vector<8x128xf32>
    %cst_19 = arith.constant dense<0xFF800000> : vector<8xf32>
    %27 = vector.multi_reduction <maximumf>, %26, %cst_19 [1] : vector<8x128xf32> to vector<8xf32>
    %28 = vector.shape_cast %27 : vector<8xf32> to vector<8x1xf32>
    %29 = vector.broadcast %28 : vector<8x1xf32> to vector<8x128xf32>
    %30 = arith.subf %26, %29 : vector<8x128xf32>
    %31 = math.exp %30 : vector<8x128xf32>
    %cst_20 = arith.constant dense<0.000000e+00> : vector<8xf32>
    %32 = vector.multi_reduction <add>, %31, %cst_20 [1] : vector<8x128xf32> to vector<8xf32>
    %33 = vector.shape_cast %32 : vector<8xf32> to vector<8x1xf32>
    %34 = tpu.reciprocal %33 {approx = true} : vector<8x1xf32> -> vector<8x1xf32>
    %35 = arith.mulf %33, %34 : vector<8x1xf32>
    %cst_21 = arith.constant 2.000000e+00 : f32
    %36 = vector.broadcast %cst_21 : f32 to vector<8x1xf32>
    %37 = arith.subf %36, %35 : vector<8x1xf32>
    %38 = arith.mulf %34, %37 : vector<8x1xf32>
    %39 = vector.broadcast %38 : vector<8x1xf32> to vector<8x128xf32>
    %40 = arith.mulf %31, %39 : vector<8x128xf32>
    %c8_i32_22 = arith.constant 8 : i32
    %41 = vector.broadcast %c8_i32_22 : i32 to vector<8x128xi32>
    %42 = arith.cmpi eq, %20, %41 : vector<8x128xi32>
    %43 = arith.select %42, %19, %40 : vector<8x128xi1>, vector<8x128xf32>
    %c0_23 = arith.constant 0 : index
    %c0_24 = arith.constant 0 : index
    %44 = vector.load %arg8[%c0_23, %c0_24] : memref<8x128xf32, #tpu.memory_space<vmem>>, vector<8x128xf32>
    tpu.vector_store %arg8[%c0_23, %c0_24], %43 {strides = array<i32>} : memref<8x128xf32, #tpu.memory_space<vmem>>, vector<8x128xf32>,
    return
  }
  func.func @transform_0(%arg0: i32) -> (i32, i32) {
    %c0_i32 = arith.constant 0 : i32
    %c0_i32_0 = arith.constant 0 : i32
    return %arg0, %c0_i32 : i32, i32
  }
  func.func @transform_1(%arg0: i32) -> (i32, i32) {
    %c0_i32 = arith.constant 0 : i32
    %c0_i32_0 = arith.constant 0 : i32
    %c0_i32_1 = arith.constant 0 : i32
    return %c0_i32, %c0_i32_0 : i32, i32
  }
  func.func @transform_2(%arg0: i32) -> (i32, i32) {
    %c0_i32 = arith.constant 0 : i32
    %c0_i32_0 = arith.constant 0 : i32
    %c0_i32_1 = arith.constant 0 : i32
    return %c0_i32, %c0_i32_0 : i32, i32
  }
  func.func @transform_3(%arg0: i32) -> (i32, i32) {
    %c0_i32 = arith.constant 0 : i32
    %c0_i32_0 = arith.constant 0 : i32
    %c0_i32_1 = arith.constant 0 : i32
    return %c0_i32, %c0_i32_0 : i32, i32
  }
  func.func @transform_4(%arg0: i32) -> (i32, i32) {
    %c0_i32 = arith.constant 0 : i32
    %c0_i32_0 = arith.constant 0 : i32
    %c0_i32_1 = arith.constant 0 : i32
    return %c0_i32, %c0_i32_0 : i32, i32
  }
  func.func @transform_5(%arg0: i32) -> (i32, i32) {
    %c0_i32 = arith.constant 0 : i32
    %c0_i32_0 = arith.constant 0 : i32
    %c0_i32_1 = arith.constant 0 : i32
    return %c0_i32, %c0_i32_0 : i32, i32
  }
  func.func @transform_6(%arg0: i32) -> (i32, i32) {
    %c0_i32 = arith.constant 0 : i32
    %c0_i32_0 = arith.constant 0 : i32
    %c0_i32_1 = arith.constant 0 : i32
    return %c0_i32, %c0_i32_0 : i32, i32
  }
  func.func @transform_7(%arg0: i32) -> (i32, i32) {
    %c0_i32 = arith.constant 0 : i32
    %c0_i32_0 = arith.constant 0 : i32
    return %arg0, %c0_i32 : i32, i32
  }
}

</mosaic_0001>

<llo_original>
// kernel: tpu_custom_call.1
$region0: #{tpu_custom_call.1}
  #allocation0 [shape = 'u32[]', space=smem, size = 0x4, offset = 0x4, fixed_abs, tag = 'smem constant byte address 0x4 - core index']
  #allocation1 [shape = 'u32[144,128]{1,0:T(1,128)}', space=vmem, size = 0x12000, scoped, tag = 'internal scratch']
  %s0 = inlined_call_operand.hbm [shape: f32[2,32], index: 0, kind: input, shape index: {}]
  %s1 = inlined_call_operand.hbm [shape: f32[32,128], index: 1, kind: input, shape index: {}]
  %s2 = inlined_call_operand.vmem [shape: f32[1,128], index: 2, kind: input, shape index: {}]
  %s3 = inlined_call_operand.hbm [shape: f32[128,128], index: 3, kind: input, shape index: {}]
  %s4 = inlined_call_operand.vmem [shape: f32[1,128], index: 4, kind: input, shape index: {}]
  %s5 = inlined_call_operand.hbm [shape: f32[128,128], index: 5, kind: input, shape index: {}]
  %s6 = inlined_call_operand.vmem [shape: f32[1,128], index: 6, kind: input, shape index: {}]
  %s7 = inlined_call_operand.hbm [shape: f32[2,128], index: 7, kind: output, shape index: {}]
  %s8 = sld [smem:[#allocation0]]
  $region54: #{tpu_custom_call.1} parent=0
    _
  %s10 = ssub.s32 1, %s8
  %s11 = scalar_select 0, %s10, %s8
  $region1: #{tpu_custom_call.1} parent=0
    #allocation2 [shape = 'u8[4096]{0}', space=vmem, size = 0x1000, scoped, tag = 'input window, operand 0, single buffered']
    #allocation3 [shape = 's32[1]{0}', space=sflag, size = 0x4, scoped, tag = 'scoped memory for tpu_custom_call.1']
    #allocation4 [shape = 's32[1]{0}', space=sflag, size = 0x4, scoped, tag = 'scoped memory for tpu_custom_call.1']
    #allocation5 [shape = 'u8[16384]{0}', space=vmem, size = 0x4000, scoped, tag = 'input window, operand 1, single buffered']
    #allocation6 [shape = 's32[1]{0}', space=sflag, size = 0x4, scoped, tag = 'scoped memory for tpu_custom_call.1']
    #allocation7 [shape = 'u8[65536]{0}', space=vmem, size = 0x10000, scoped, tag = 'input window, operand 3, single buffered']
    #allocation8 [shape = 'u8[65536]{0}', space=vmem, size = 0x10000, scoped, tag = 'input window, operand 5, single buffered']
    #allocation9 [shape = 's32[1]{0}', space=sflag, size = 0x4, scoped, tag = 'scoped memory for tpu_custom_call.1']
    #allocation10 [shape = 'u8[4096]{0}', space=vmem, size = 0x1000, scoped, tag = 'output window, operand 0, single buffered']
    %12 = vsyncpa [#allocation3], 0
    %13 = vsyncpa [#allocation6], 0
    %14 = vsyncpa [#allocation9], 0
    %15 = vsyncpa [#allocation4], 0
    // Predicated region
    $region2: #{tpu_custom_call.1} parent=1 // pred_check
      _
    $region3: #{tpu_custom_call.1} parent=1 // pred_check_branch
      %17 = sbr.rel (0) target = $region5
    $region4: #{tpu_custom_call.1} parent=1 // pred_region
      %s19 = ssub.s32 128, 32
      %20 = vsyncadd [#allocation3], %s19
      %s21 = sshll.u32 [#allocation2], 4
      %s22 = int_to_ptr.vmem [resolvable:$true] %s21
      %27 = dma.hbm_to_vmem [thread:$0]  %s0, 32, %s22, [#allocation3], 32, 32, 2
    $region5: #{tpu_custom_call.1} parent=1 // pred_fallthru
      _
    // Predicated region
    $region6: #{tpu_custom_call.1} parent=1 // pred_check
      _
    $region7: #{tpu_custom_call.1} parent=1 // pred_check_branch
      %29 = sbr.rel (0) target = $region9
    $region8: #{tpu_custom_call.1} parent=1 // pred_region
      %s31 = ssub.s32 512, 512
      %32 = vsyncadd [#allocation6], %s31
      %s33 = sshll.u32 [#allocation5], 4
      %s34 = int_to_ptr.vmem [resolvable:$true] %s33
      %39 = dma.hbm_to_vmem [thread:$0]  %s1, 512, %s34, [#allocation6], 128, 128, 8
    $region9: #{tpu_custom_call.1} parent=1 // pred_fallthru
      _
    // Predicated region
    $region10: #{tpu_custom_call.1} parent=1 // pred_check
      _
    $region11: #{tpu_custom_call.1} parent=1 // pred_check_branch
      %41 = sbr.rel (0) target = $region13
    $region12: #{tpu_custom_call.1} parent=1 // pred_region
      _
    $region13: #{tpu_custom_call.1} parent=1 // pred_fallthru
      _
    // Predicated region
    $region14: #{tpu_custom_call.1} parent=1 // pred_check
      _
    $region15: #{tpu_custom_call.1} parent=1 // pred_check_branch
      %43 = sbr.rel (0) target = $region17
    $region16: #{tpu_custom_call.1} parent=1 // pred_region
      %s45 = ssub.s32 2048, 2048
      %46 = vsyncadd [#allocation6], %s45
      %s47 = sshll.u32 [#allocation7], 4
      %s48 = int_to_ptr.vmem [resolvable:$true] %s47
      %53 = dma.hbm_to_vmem [thread:$0]  %s3, 2048, %s48, [#allocation6], 128, 128, 8
    $region17: #{tpu_custom_call.1} parent=1 // pred_fallthru
      _
    // Predicated region
    $region18: #{tpu_custom_call.1} parent=1 // pred_check
      _
    $region19: #{tpu_custom_call.1} parent=1 // pred_check_branch
      %55 = sbr.rel (0) target = $region21
    $region20: #{tpu_custom_call.1} parent=1 // pred_region
      _
    $region21: #{tpu_custom_call.1} parent=1 // pred_fallthru
      _
    // Predicated region
    $region22: #{tpu_custom_call.1} parent=1 // pred_check
      _
    $region23: #{tpu_custom_call.1} parent=1 // pred_check_branch
      %57 = sbr.rel (0) target = $region25
    $region24: #{tpu_custom_call.1} parent=1 // pred_region
      %s59 = ssub.s32 2048, 2048
      %60 = vsyncadd [#allocation9], %s59
      %s61 = sshll.u32 [#allocation8], 4
      %s62 = int_to_ptr.vmem [resolvable:$true] %s61
      %67 = dma.hbm_to_vmem [thread:$0]  %s5, 2048, %s62, [#allocation9], 128, 128, 8
    $region25: #{tpu_custom_call.1} parent=1 // pred_fallthru
      _
    // Predicated region
    $region26: #{tpu_custom_call.1} parent=1 // pred_check
      _
    $region27: #{tpu_custom_call.1} parent=1 // pred_check_branch
      %69 = sbr.rel (0) target = $region29
    $region28: #{tpu_custom_call.1} parent=1 // pred_region
      _
    $region29: #{tpu_custom_call.1} parent=1 // pred_fallthru
      _
    // Predicated region
    $region30: #{tpu_custom_call.1} parent=1 // pred_check
      _
    $region31: #{tpu_custom_call.1} parent=1 // pred_check_branch
      %71 = sbr.rel (0) target = $region33
    $region32: #{tpu_custom_call.1} parent=1 // pred_region
      %72 = dma.done [#allocation3], 128
    $region33: #{tpu_custom_call.1} parent=1 // pred_fallthru
      _
    // Predicated region
    $region34: #{tpu_custom_call.1} parent=1 // pred_check
      _
    $region35: #{tpu_custom_call.1} parent=1 // pred_check_branch
      %74 = sbr.rel (0) target = $region37
    $region36: #{tpu_custom_call.1} parent=1 // pred_region
      %75 = dma.done [#allocation6], 512
    $region37: #{tpu_custom_call.1} parent=1 // pred_fallthru
      _
    // Predicated region
    $region38: #{tpu_custom_call.1} parent=1 // pred_check
      _
    $region39: #{tpu_custom_call.1} parent=1 // pred_check_branch
      %77 = sbr.rel (0) target = $region41
    $region40: #{tpu_custom_call.1} parent=1 // pred_region
      %78 = dma.done [#allocation6], 2048
    $region41: #{tpu_custom_call.1} parent=1 // pred_fallthru
      _
    // Predicated region
    $region42: #{tpu_custom_call.1} parent=1 // pred_check
      _
    $region43: #{tpu_custom_call.1} parent=1 // pred_check_branch
      %80 = sbr.rel (0) target = $region45
    $region44: #{tpu_custom_call.1} parent=1 // pred_region
      %81 = dma.done [#allocation9], 2048
    $region45: #{tpu_custom_call.1} parent=1 // pred_fallthru
      _
    %v82 = vld [vmem:[#allocation2] sm:$0xff]
    %v83 = vld [vmem:[#allocation5] sm:$0xff]
    %v84 = vld [vmem:[#allocation5 + $0x8] sm:$0xff]
    %v85 = vld [vmem:[#allocation5 + $0x10] sm:$0xff]
    %v86 = vld [vmem:[#allocation5 + $0x18] sm:$0xff]
    %v87 = vld [vmem:[%s2] sm:$0x1]
    %v89 = vlaneseq
    %v90 = vshrl.u32 %v89, 7
    %v91 = vsub.s32 0, %v90
    %v92 = vrot.slane %v87, %v91
    %vm94 = vcmask 261120
    %v96 = vsel %vm94, %v82, 0
    %98 = vmatprep.subr.mxu0 0.0
    %99 = vmatpush1.msra.mxu0 0.0
    %100 = vmatprep.subr.mxu0 0.0
    %101 = vmatpush1.msra.mxu0 0.0
    %102 = vmatprep.subr.mxu0 0.0
    %103 = vmatpush1.msra.mxu0 0.0
    %104 = vmatprep.subr.mxu0 0.0
    %105 = vmatpush1.msra.mxu0 0.0
    %106 = vmatprep.subr.mxu0 0.0
    %107 = vmatpush1.msra.mxu0 0.0
    %108 = vmatprep.subr.mxu0 0.0
    %109 = vmatpush1.msra.mxu0 0.0
    %110 = vmatprep.subr.mxu0 0.0
    %111 = vmatpush1.msra.mxu0 0.0
    %112 = vmatprep.subr.mxu0 0.0
    %113 = vmatpush1.msra.mxu0 0.0
    %114 = vmatprep.subr.mxu0 0.0
    %115 = vmatpush1.msra.mxu0 0.0
    %116 = vmatprep.subr.mxu0 0.0
    %117 = vmatpush1.msra.mxu0 0.0
    %118 = vmatprep.subr.mxu0 0.0
    %119 = vmatpush1.msra.mxu0 0.0
    %120 = vmatprep.subr.mxu0 0.0
    %121 = vmatpush1.msra.mxu0 0.0
    %122 = vmatprep.subr.mxu0 0.0
    %123 = vmatpush1.msra.mxu0 %v86
    %124 = vmatprep.subr.mxu0 0.0
    %125 = vmatpush1.msra.mxu0 %v85
    %126 = vmatprep.subr.mxu0 0.0
    %127 = vmatpush1.msra.mxu0 %v84
    %128 = vmatprep.subr.mxu0 0.0
    %129 = vmatpush1.msra.mxu0 %v83
    %130 = vmatprep.subr.mxu0 0.0
    %131 = vmatpush2.msra.mxu0 0.0
    %132 = vmatprep.subr.mxu0 0.0
    %133 = vmatpush2.msra.mxu0 0.0
    %134 = vmatprep.subr.mxu0 0.0
    %135 = vmatpush2.msra.mxu0 0.0
    %136 = vmatprep.subr.mxu0 0.0
    %137 = vmatpush2.msra.mxu0 0.0
    %138 = vmatprep.subr.mxu0 0.0
    %139 = vmatpush2.msra.mxu0 0.0
    %140 = vmatprep.subr.mxu0 0.0
    %141 = vmatpush2.msra.mxu0 0.0
    %142 = vmatprep.subr.mxu0 0.0
    %143 = vmatpush2.msra.mxu0 0.0
    %144 = vmatprep.subr.mxu0 0.0
    %145 = vmatpush2.msra.mxu0 0.0
    %146 = vmatprep.subr.mxu0 0.0
    %147 = vmatpush2.msra.mxu0 0.0
    %148 = vmatprep.subr.mxu0 0.0
    %149 = vmatpush2.msra.mxu0 0.0
    %150 = vmatprep.subr.mxu0 0.0
    %151 = vmatpush2.msra.mxu0 0.0
    %152 = vmatprep.subr.mxu0 0.0
    %153 = vmatpush2.msra.mxu0 0.0
    %154 = vmatprep.subr.mxu0 0.0
    %155 = vmatpush2.msra.mxu0 0.0
    %156 = vmatprep.subr.mxu0 0.0
    %157 = vmatpush2.msra.mxu0 0.0
    %158 = vmatprep.subr.mxu0 0.0
    %159 = vmatpush2.msra.mxu0 0.0
    %160 = vmatprep.subr.mxu0 0.0
    %161 = vmatpush2.msra.mxu0 0.0
    %162 = vmatprep.mubr.f32.mxu0 0.0
    %163 = vmatmul.mubr.f32.gmra.mxu0 %v96
    %v164 = vpop.f32.mrf.mxu0
    %v165 = vadd.f32 %v92, %v164
    %v166 = vpop.f32.mrf.mxu0
    %167 = vdwg.mxu0
    %v168 = vmax.f32 %v165, 0.0
    %v169 = vld [vmem:[#allocation7] sm:$0xff]
    %v170 = vld [vmem:[#allocation7 + $0x8] sm:$0xff]
    %v171 = vld [vmem:[#allocation7 + $0x10] sm:$0xff]
    %v172 = vld [vmem:[#allocation7 + $0x18] sm:$0xff]
    %v173 = vld [vmem:[#allocation7 + $0x20] sm:$0xff]
    %v174 = vld [vmem:[#allocation7 + $0x28] sm:$0xff]
    %v175 = vld [vmem:[#allocation7 + $0x30] sm:$0xff]
    %v176 = vld [vmem:[#allocation7 + $0x38] sm:$0xff]
    %v177 = vld [vmem:[#allocation7 + $0x40] sm:$0xff]
    %v178 = vld [vmem:[#allocation7 + $0x48] sm:$0xff]
    %v179 = vld [vmem:[#allocation7 + $0x50] sm:$0xff]
    %v180 = vld [vmem:[#allocation7 + $0x58] sm:$0xff]
    %v181 = vld [vmem:[#allocation7 + $0x60] sm:$0xff]
    %v182 = vld [vmem:[#allocation7 + $0x68] sm:$0xff]
    %v183 = vld [vmem:[#allocation7 + $0x70] sm:$0xff]
    %v184 = vld [vmem:[#allocation7 + $0x78] sm:$0xff]
    %v185 = vld [vmem:[%s4] sm:$0x1]
    %v187 = vlaneseq
    %v188 = vshrl.u32 %v187, 7
    %v189 = vsub.s32 0, %v188
    %v190 = vrot.slane %v185, %v189
    %192 = vmatprep.subr.mxu0 0.0
    %193 = vmatpush1.msra.mxu0 %v184
    %194 = vmatprep.subr.mxu0 0.0
    %195 = vmatpush1.msra.mxu0 %v183
    %196 = vmatprep.subr.mxu0 0.0
    %197 = vmatpush1.msra.mxu0 %v182
    %198 = vmatprep.subr.mxu0 0.0
    %199 = vmatpush1.msra.mxu0 %v181
    %200 = vmatprep.subr.mxu0 0.0
    %201 = vmatpush1.msra.mxu0 %v180
    %202 = vmatprep.subr.mxu0 0.0
    %203 = vmatpush1.msra.mxu0 %v179
    %204 = vmatprep.subr.mxu0 0.0
    %205 = vmatpush1.msra.mxu0 %v178
    %206 = vmatprep.subr.mxu0 0.0
    %207 = vmatpush1.msra.mxu0 %v177
    %208 = vmatprep.subr.mxu0 0.0
    %209 = vmatpush1.msra.mxu0 %v176
    %210 = vmatprep.subr.mxu0 0.0
    %211 = vmatpush1.msra.mxu0 %v175
    %212 = vmatprep.subr.mxu0 0.0
    %213 = vmatpush1.msra.mxu0 %v174
    %214 = vmatprep.subr.mxu0 0.0
    %215 = vmatpush1.msra.mxu0 %v173
    %216 = vmatprep.subr.mxu0 0.0
    %217 = vmatpush1.msra.mxu0 %v172
    %218 = vmatprep.subr.mxu0 0.0
    %219 = vmatpush1.msra.mxu0 %v171
    %220 = vmatprep.subr.mxu0 0.0
    %221 = vmatpush1.msra.mxu0 %v170
    %222 = vmatprep.subr.mxu0 0.0
    %223 = vmatpush1.msra.mxu0 %v169
    %224 = vmatprep.subr.mxu0 0.0
    %225 = vmatpush2.msra.mxu0 0.0
    %226 = vmatprep.subr.mxu0 0.0
    %227 = vmatpush2.msra.mxu0 0.0
    %228 = vmatprep.subr.mxu0 0.0
    %229 = vmatpush2.msra.mxu0 0.0
    %230 = vmatprep.subr.mxu0 0.0
    %231 = vmatpush2.msra.mxu0 0.0
    %232 = vmatprep.subr.mxu0 0.0
    %233 = vmatpush2.msra.mxu0 0.0
    %234 = vmatprep.subr.mxu0 0.0
    %235 = vmatpush2.msra.mxu0 0.0
    %236 = vmatprep.subr.mxu0 0.0
    %237 = vmatpush2.msra.mxu0 0.0
    %238 = vmatprep.subr.mxu0 0.0
    %239 = vmatpush2.msra.mxu0 0.0
    %240 = vmatprep.subr.mxu0 0.0
    %241 = vmatpush2.msra.mxu0 0.0
    %242 = vmatprep.subr.mxu0 0.0
    %243 = vmatpush2.msra.mxu0 0.0
    %244 = vmatprep.subr.mxu0 0.0
    %245 = vmatpush2.msra.mxu0 0.0
    %246 = vmatprep.subr.mxu0 0.0
    %247 = vmatpush2.msra.mxu0 0.0
    %248 = vmatprep.subr.mxu0 0.0
    %249 = vmatpush2.msra.mxu0 0.0
    %250 = vmatprep.subr.mxu0 0.0
    %251 = vmatpush2.msra.mxu0 0.0
    %252 = vmatprep.subr.mxu0 0.0
    %253 = vmatpush2.msra.mxu0 0.0
    %254 = vmatprep.subr.mxu0 0.0
    %255 = vmatpush2.msra.mxu0 0.0
    %256 = vmatprep.mubr.f32.mxu0 0.0
    %257 = vmatmul.mubr.f32.gmra.mxu0 %v168
    %v258 = vpop.f32.mrf.mxu0
    %v259 = vadd.f32 %v190, %v258
    %v260 = vpop.f32.mrf.mxu0
    %261 = vdwg.mxu0
    %v262 = vmax.f32 %v259, 0.0
    %v263 = vld [vmem:[#allocation8] sm:$0xff]
    %v264 = vld [vmem:[#allocation8 + $0x8] sm:$0xff]
    %v265 = vld [vmem:[#allocation8 + $0x10] sm:$0xff]
    %v266 = vld [vmem:[#allocation8 + $0x18] sm:$0xff]
    %v267 = vld [vmem:[#allocation8 + $0x20] sm:$0xff]
    %v268 = vld [vmem:[#allocation8 + $0x28] sm:$0xff]
    %v269 = vld [vmem:[#allocation8 + $0x30] sm:$0xff]
    %v270 = vld [vmem:[#allocation8 + $0x38] sm:$0xff]
    %v271 = vld [vmem:[#allocation8 + $0x40] sm:$0xff]
    %v272 = vld [vmem:[#allocation8 + $0x48] sm:$0xff]
    %v273 = vld [vmem:[#allocation8 + $0x50] sm:$0xff]
    %v274 = vld [vmem:[#allocation8 + $0x58] sm:$0xff]
    %v275 = vld [vmem:[#allocation8 + $0x60] sm:$0xff]
    %v276 = vld [vmem:[#allocation8 + $0x68] sm:$0xff]
    %v277 = vld [vmem:[#allocation8 + $0x70] sm:$0xff]
    %v278 = vld [vmem:[#allocation8 + $0x78] sm:$0xff]
    %v279 = vld [vmem:[%s6] sm:$0x1]
    %v281 = vlaneseq
    %v282 = vshrl.u32 %v281, 7
    %v283 = vsub.s32 0, %v282
    %v284 = vrot.slane %v279, %v283
    %286 = vmatprep.subr.mxu0 0.0
    %287 = vmatpush1.msra.mxu0 %v278
    %288 = vmatprep.subr.mxu0 0.0
    %289 = vmatpush1.msra.mxu0 %v277
    %290 = vmatprep.subr.mxu0 0.0
    %291 = vmatpush1.msra.mxu0 %v276
    %292 = vmatprep.subr.mxu0 0.0
    %293 = vmatpush1.msra.mxu0 %v275
    %294 = vmatprep.subr.mxu0 0.0
    %295 = vmatpush1.msra.mxu0 %v274
    %296 = vmatprep.subr.mxu0 0.0
    %297 = vmatpush1.msra.mxu0 %v273
    %298 = vmatprep.subr.mxu0 0.0
    %299 = vmatpush1.msra.mxu0 %v272
    %300 = vmatprep.subr.mxu0 0.0
    %301 = vmatpush1.msra.mxu0 %v271
    %302 = vmatprep.subr.mxu0 0.0
    %303 = vmatpush1.msra.mxu0 %v270
    %304 = vmatprep.subr.mxu0 0.0
    %305 = vmatpush1.msra.mxu0 %v269
    %306 = vmatprep.subr.mxu0 0.0
    %307 = vmatpush1.msra.mxu0 %v268
    %308 = vmatprep.subr.mxu0 0.0
    %309 = vmatpush1.msra.mxu0 %v267
    %310 = vmatprep.subr.mxu0 0.0
    %311 = vmatpush1.msra.mxu0 %v266
    %312 = vmatprep.subr.mxu0 0.0
    %313 = vmatpush1.msra.mxu0 %v265
    %314 = vmatprep.subr.mxu0 0.0
    %315 = vmatpush1.msra.mxu0 %v264
    %316 = vmatprep.subr.mxu0 0.0
    %317 = vmatpush1.msra.mxu0 %v263
    %318 = vmatprep.subr.mxu0 0.0
    %319 = vmatpush2.msra.mxu0 0.0
    %320 = vmatprep.subr.mxu0 0.0
    %321 = vmatpush2.msra.mxu0 0.0
    %322 = vmatprep.subr.mxu0 0.0
    %323 = vmatpush2.msra.mxu0 0.0
    %324 = vmatprep.subr.mxu0 0.0
    %325 = vmatpush2.msra.mxu0 0.0
    %326 = vmatprep.subr.mxu0 0.0
    %327 = vmatpush2.msra.mxu0 0.0
    %328 = vmatprep.subr.mxu0 0.0
    %329 = vmatpush2.msra.mxu0 0.0
    %330 = vmatprep.subr.mxu0 0.0
    %331 = vmatpush2.msra.mxu0 0.0
    %332 = vmatprep.subr.mxu0 0.0
    %333 = vmatpush2.msra.mxu0 0.0
    %334 = vmatprep.subr.mxu0 0.0
    %335 = vmatpush2.msra.mxu0 0.0
    %336 = vmatprep.subr.mxu0 0.0
    %337 = vmatpush2.msra.mxu0 0.0
    %338 = vmatprep.subr.mxu0 0.0
    %339 = vmatpush2.msra.mxu0 0.0
    %340 = vmatprep.subr.mxu0 0.0
    %341 = vmatpush2.msra.mxu0 0.0
    %342 = vmatprep.subr.mxu0 0.0
    %343 = vmatpush2.msra.mxu0 0.0
    %344 = vmatprep.subr.mxu0 0.0
    %345 = vmatpush2.msra.mxu0 0.0
    %346 = vmatprep.subr.mxu0 0.0
    %347 = vmatpush2.msra.mxu0 0.0
    %348 = vmatprep.subr.mxu0 0.0
    %349 = vmatpush2.msra.mxu0 0.0
    %350 = vmatprep.mubr.f32.mxu0 0.0
    %351 = vmatmul.mubr.f32.gmra.mxu0 %v262
    %v352 = vpop.f32.mrf.mxu0
    %v353 = vadd.f32 %v284, %v352
    %v354 = vpop.f32.mrf.mxu0
    %355 = vdwg.mxu0
    %v356 = vlaneseq
    %v357 = vand.u32 %v356, 127
    %vm358 = vcmp.lt.s32.totalorder %v357, 8
    %v359 = vmax.f32 %v353, 0.0
    %v360 = vsel %vm358, %v359, -inf
    %361 = vmax.xlane.f32.xlu0 %v360
    %v362 = vpop.xlane.xlu0 %361
    %v363 = vsub.f32 %v360, %v362
    %v364 = vmul.f32 %v363, 1.442695
    %v365 = vpow.pop %v364
    %366 = vadd.xlane.f32.xlu0 %v365
    %v367 = vpop.xlane.xlu0 %366
    %v368 = vrcp.pop %v367
    %v369 = vmul.f32 %v367, %v368
    %v370 = vsub.f32 2.0, %v369
    %v371 = vmul.f32 %v368, %v370
    %v372 = vmul.f32 %v365, %v371
    %vm373 = vcmp.eq.s32.totalorder %v357, 8
    %v374 = vsel %vm373, %v353, %v372
    %375 = vst [vmem:[#allocation10] sm:$0xff] %v374
    // Predicated region
    $region46: #{tpu_custom_call.1} parent=1 // pred_check
      _
    $region47: #{tpu_custom_call.1} parent=1 // pred_check_branch
      %377 = sbr.rel (0) target = $region49
    $region48: #{tpu_custom_call.1} parent=1 // pred_region
      %s379 = ssub.s32 128, 32
      %380 = vsyncadd [#allocation4], %s379
      %s381 = sshll.u32 [#allocation10], 4
      %s382 = int_to_ptr.vmem [resolvable:$true] %s381
      %387 = dma.vmem_to_hbm [thread:$0]  %s382, 32, %s7, [#allocation4], 32, 32, 2
    $region49: #{tpu_custom_call.1} parent=1 // pred_fallthru
      _
    // Predicated region
    $region50: #{tpu_custom_call.1} parent=1 // pred_check
      _
    $region51: #{tpu_custom_call.1} parent=1 // pred_check_branch
      %389 = sbr.rel (0) target = $region53
    $region52: #{tpu_custom_call.1} parent=1 // pred_region
      %390 = dma.done [#allocation4], 128
    $region53: #{tpu_custom_call.1} parent=1 // pred_fallthru
      _
    %391 = vsyncpa [#allocation3], 1
    %392 = vsyncpa [#allocation6], 1
    %393 = vsyncpa [#allocation9], 1
    %394 = vsyncpa [#allocation4], 1

</llo_original>
